<compile_context>
chip_gen: v5e
topology: v5e:2x2
jax: 0.10.0
libtpu: 0.0.40
codegen_flags: <defaults>
</compile_context>

<pallas_src>
import functools

import jax
import jax.numpy as jnp
from jax.experimental import pallas as pl
from jax.experimental.pallas import tpu as pltpu


def _round_up(x, m):
    return ((x + m - 1) // m) * m


def pose_predict_kernel(x_ref, w1_ref, b1_ref, wh1_ref, bh1_ref, wh2_ref, bh2_ref,
                        out_ref):
    # x_ref block: (TM, P*C) bf16 -- rows are flattened (batch, sampled-grasp) pairs.
    x = x_ref[...]                                            # bf16, lane-dense K=P*C

    # fused mean + conv1 (1x1 conv == matmul) + ReLU: (TM, P*C) @ (P*C, C)
    feat = jnp.dot(x, w1_ref[...], preferred_element_type=jnp.float32) + b1_ref[...]
    feat = jnp.maximum(feat, 0.0).astype(jnp.bfloat16)        # (TM, C)

    # fused head first layers: [second_contact | angle] -> (TM, 2H)
    h = jnp.dot(feat, wh1_ref[...], preferred_element_type=jnp.float32) + bh1_ref[...]
    h = jnp.maximum(h, 0.0).astype(jnp.bfloat16)              # (TM, 2H)

    # fused head second layers (block-diagonal): (TM, 4) = [sc(3) | angle(1)]
    y = jnp.dot(h, wh2_ref[...], preferred_element_type=jnp.float32) + bh2_ref[...]

    out_ref[...] = jnp.tanh(y)                                # use_tanh=True


@functools.partial(jax.jit, static_argnames=("tile_m",))
def pose_predict_batch(gather_feat, params, *, tile_m=2048):
    """gather_feat: (B, M, P, C). Returns (second_contact (B, M, 3), angle (B, M, 1))."""
    B, M, P, C = gather_feat.shape
    H = params["wsc1"].shape[1]
    N = B * M
    K = P * C

    # ---- fuse / pre-scale parameters once under jit (cheap vs. the kernel) ----
    # Fold the mean's 1/P into a replicated (P*C, C) weight so the kernel does a
    # single K=P*C matmul instead of a P-sum followed by a K=C matmul.
    w1rep = jnp.tile(params["w1"] * (1.0 / P), (P, 1)).astype(jnp.bfloat16)     # (K, C)
    b1 = params["b1"].astype(jnp.float32)                                        # (1, C)
    wh1 = jnp.concatenate([params["wsc1"], params["wan1"]], axis=1)              # (C, 2H)
    wh1 = wh1.astype(jnp.bfloat16)
    bh1 = jnp.concatenate([params["bsc1"], params["ban1"]], axis=1).astype(jnp.float32)
    wh2 = jnp.zeros((2 * H, 4), jnp.float32)                                     # block-diag
    wh2 = wh2.at[:H, :3].set(params["wsc2"]).at[H:, 3:].set(params["wan2"])
    wh2 = wh2.astype(jnp.bfloat16)
    bh2 = jnp.concatenate([params["bsc2"], params["ban2"]], axis=1).astype(jnp.float32)

    # ---- lane-dense (N, P*C) view of the input; no pad, cast only if needed ----
    x = gather_feat.reshape(N, K)
    if x.dtype != jnp.bfloat16:
        # In production the producer should already emit bf16 so this is a no-op.
        x = x.astype(jnp.bfloat16)

    # ---- tile choice: big tiles, but keep >=4 grid steps for megacore/pipelining ----
    tile_m = max(128, _round_up(tile_m, 128))
    if N <= 256:
        tm = N                                   # single full-array block (layout-legal)
    else:
        tm = min(tile_m, _round_up(pl.cdiv(N, 4), 128))
    grid = (pl.cdiv(N, tm),)

    # ---- VMEM budget: double-buffered bf16 input tile dominates; cap per-generation ----
    try:
        vmem_cap = int(pltpu.get_tpu_info().vmem_capacity_bytes)
    except Exception:
        vmem_cap = 64 * 1024 * 1024              # conservative (v7x) fallback
    tile_bytes = tm * K * 2                      # bf16 input tile
    out_tile_bytes = tm * 4 * 4                  # f32 output tile
    weight_bytes = 2 * (K * C + C * 2 * H + 2 * H * 4) + 4 * (C + 2 * H + 4)
    vmem_limit = int(min(vmem_cap - 8 * 1024 * 1024,
                         max(32 * 1024 * 1024,
                             2 * tile_bytes + 2 * out_tile_bytes + 2 * weight_bytes
                             + (8 << 20))))

    cost = pl.CostEstimate(
        flops=N * (2 * K * C + 2 * C * 2 * H + 2 * 2 * H * 4),
        transcendentals=N * 4,
        bytes_accessed=N * K * 2 + N * 4 * 4 + weight_bytes,
    )

    def _replicated(shape):
        ndim = len(shape)
        return pl.BlockSpec(shape, lambda i, _n=ndim: (0,) * _n)

    in_specs = [
        pl.BlockSpec((tm, K), lambda i: (i, 0)),              # gather_feat row tile
        _replicated((K, C)), _replicated((1, C)),             # fused mean + conv1
        _replicated((C, 2 * H)), _replicated((1, 2 * H)),     # fused head layer 1
        _replicated((2 * H, 4)), _replicated((1, 4)),         # fused head layer 2
    ]
    out_specs = pl.BlockSpec((tm, 4), lambda i: (i, 0))
    out_shape = jax.ShapeDtypeStruct((N, 4), jnp.float32)

    out = pl.pallas_call(
        pose_predict_kernel,
        grid=grid,
        in_specs=in_specs,
        out_specs=out_specs,
        out_shape=out_shape,
        compiler_params=pltpu.CompilerParams(
            dimension_semantics=("parallel",),
            vmem_limit_bytes=vmem_limit,
        ),
        cost_estimate=cost,
    )(x, w1rep, b1, wh1, bh1, wh2, bh2)

    out = out.reshape(B, M, 4)
    return out[:, :, :3], out[:, :, 3:]


def init_params(key, input_dim, hidden):
    """Deterministic synthetic parameters. Weights stored as (C_in, C_out)."""
    ks = jax.random.split(key, 10)
    scale = 0.1
    return {
        "w1":   scale * jax.random.normal(ks[0], (input_dim, input_dim), jnp.float32),
        "b1":   scale * jax.random.normal(ks[1], (1, input_dim), jnp.float32),
        "wsc1": scale * jax.random.normal(ks[2], (input_dim, hidden), jnp.float32),
        "bsc1": scale * jax.random.normal(ks[3], (1, hidden), jnp.float32),
        "wsc2": scale * jax.random.normal(ks[4], (hidden, 3), jnp.float32),
        "bsc2": scale * jax.random.normal(ks[5], (1, 3), jnp.float32),
        "wan1": scale * jax.random.normal(ks[6], (input_dim, hidden), jnp.float32),
        "ban1": scale * jax.random.normal(ks[7], (1, hidden), jnp.float32),
        "wan2": scale * jax.random.normal(ks[8], (hidden, 1), jnp.float32),
        "ban2": scale * jax.random.normal(ks[9], (1, 1), jnp.float32),
    }


def reference_forward(gather_feat, p):
    """Pure-JAX f32 reference mirroring the PyTorch forward (channels-last math)."""
    feat_agg = jnp.mean(gather_feat, axis=2)                       # (B, M, C)
    feat = jax.nn.relu(feat_agg @ p["w1"] + p["b1"])               # (B, M, C)
    sc = jnp.tanh(jax.nn.relu(feat @ p["wsc1"] + p["bsc1"]) @ p["wsc2"] + p["bsc2"])
    an = jnp.tanh(jax.nn.relu(feat @ p["wan1"] + p["ban1"]) @ p["wan2"] + p["ban2"])
    return sc, an


if __name__ == "__main__":
    # Small, module-consistent shapes: batch=2, sampled grasps M=16,
    # point_num P=8, input_dim C=32, hidden H=32.
    B, M, P, C, H = 2, 16, 8, 32, 32

    key = jax.random.PRNGKey(0)
    k_x, k_p = jax.random.split(key)
    gather_feat_f32 = jax.random.normal(k_x, (B, M, P, C), jnp.float32)
    params = init_params(k_p, C, H)

    # Producer emits bf16 (so the wrapper/kernel path has no extra cast/pad HBM pass).
    gather_feat = gather_feat_f32.astype(jnp.bfloat16)

    second_contact, angle = pose_predict_batch(gather_feat, params)
    second_contact = jax.block_until_ready(second_contact)
    angle = jax.block_until_ready(angle)

    # Correctness check against an f32 pure-JAX reference on the bf16-quantized input.
    # The kernel uses bf16 matmul operands (f32 accumulation), so tolerance ~1e-2.
    gf_q = gather_feat.astype(jnp.float32)
    sc_ref, an_ref = reference_forward(gf_q, params)
    assert second_contact.shape == (B, M, 3)
    assert angle.shape == (B, M, 1)
    assert jnp.allclose(second_contact, sc_ref, atol=1e-2, rtol=1e-2)
    assert jnp.allclose(angle, an_ref, atol=1e-2, rtol=1e-2)

    print("KERNEL_OK")
</pallas_src>

<mosaic_0001>
module attributes {stable_mosaic.version = 11 : i64} {
  func.func @pose_predict_kernel(%arg0: i32, %arg1: memref<32x256xbf16, #tpu.memory_space<vmem>>, %arg2: memref<256x32xbf16, #tpu.memory_space<vmem>>, %arg3: memref<1x32xf32, #tpu.memory_space<vmem>>, %arg4: memref<32x64xbf16, #tpu.memory_space<vmem>>, %arg5: memref<1x64xf32, #tpu.memory_space<vmem>>, %arg6: memref<64x4xbf16, #tpu.memory_space<vmem>>, %arg7: memref<1x4xf32, #tpu.memory_space<vmem>>, %arg8: memref<32x4xf32, #tpu.memory_space<vmem>>) attributes {dimension_semantics = [#tpu.dimension_semantics<parallel>], iteration_bounds = array<i64: 1>, scalar_prefetch = 0 : i64, scratch_operands = 0 : i64, tpu.core_type = #tpu.core_type<tc>, window_params = [{transform_indices = @transform_0, window_bounds = array<i64: 32, 256>}, {pipeline_mode = #tpu.pipeline_mode<synchronous>, transform_indices = @transform_1, window_bounds = array<i64: 256, 32>}, {pipeline_mode = #tpu.pipeline_mode<synchronous>, transform_indices = @transform_2, window_bounds = array<i64: 1, 32>}, {pipeline_mode = #tpu.pipeline_mode<synchronous>, transform_indices = @transform_3, window_bounds = array<i64: 32, 64>}, {pipeline_mode = #tpu.pipeline_mode<synchronous>, transform_indices = @transform_4, window_bounds = array<i64: 1, 64>}, {pipeline_mode = #tpu.pipeline_mode<synchronous>, transform_indices = @transform_5, window_bounds = array<i64: 64, 4>}, {pipeline_mode = #tpu.pipeline_mode<synchronous>, transform_indices = @transform_6, window_bounds = array<i64: 1, 4>}, {transform_indices = @transform_7, window_bounds = array<i64: 32, 4>}]} {
    %c0 = arith.constant 0 : index
    %c0_0 = arith.constant 0 : index
    %0 = vector.load %arg1[%c0, %c0_0] : memref<32x256xbf16, #tpu.memory_space<vmem>>, vector<32x256xbf16>
    %c0_1 = arith.constant 0 : index
    %c0_2 = arith.constant 0 : index
    %1 = vector.load %arg2[%c0_1, %c0_2] : memref<256x32xbf16, #tpu.memory_space<vmem>>, vector<256x32xbf16>
    %cst = arith.constant dense<0.000000e+00> : vector<32x32xf32>
    %2 = tpu.matmul %0, %1, %cst {dimension_numbers = #tpu.dot_dimension_numbers<[1], [0], [0], [1], [0, 0, 1, 1], [], []>} : vector<32x256xbf16>, vector<256x32xbf16>, vector<32x32xf32> -> vector<32x32xf32>
    %c0_3 = arith.constant 0 : index
    %c0_4 = arith.constant 0 : index
    %3 = vector.load %arg3[%c0_3, %c0_4] : memref<1x32xf32, #tpu.memory_space<vmem>>, vector<1x32xf32>
    %4 = vector.broadcast %3 : vector<1x32xf32> to vector<32x32xf32>
    %5 = arith.addf %2, %4 : vector<32x32xf32>
    %cst_5 = arith.constant 0.000000e+00 : f32
    %6 = vector.broadcast %cst_5 : f32 to vector<32x32xf32>
    %7 = arith.maximumf %5, %6 : vector<32x32xf32>
    %8 = arith.truncf %7 : vector<32x32xf32> to vector<32x32xbf16>
    %c0_6 = arith.constant 0 : index
    %c0_7 = arith.constant 0 : index
    %9 = vector.load %arg4[%c0_6, %c0_7] : memref<32x64xbf16, #tpu.memory_space<vmem>>, vector<32x64xbf16>
    %cst_8 = arith.constant dense<0.000000e+00> : vector<32x64xf32>
    %10 = tpu.matmul %8, %9, %cst_8 {dimension_numbers = #tpu.dot_dimension_numbers<[1], [0], [0], [1], [0, 0, 1, 1], [], []>} : vector<32x32xbf16>, vector<32x64xbf16>, vector<32x64xf32> -> vector<32x64xf32>
    %c0_9 = arith.constant 0 : index
    %c0_10 = arith.constant 0 : index
    %11 = vector.load %arg5[%c0_9, %c0_10] : memref<1x64xf32, #tpu.memory_space<vmem>>, vector<1x64xf32>
    %12 = vector.broadcast %11 : vector<1x64xf32> to vector<32x64xf32>
    %13 = arith.addf %10, %12 : vector<32x64xf32>
    %cst_11 = arith.constant 0.000000e+00 : f32
    %14 = vector.broadcast %cst_11 : f32 to vector<32x64xf32>
    %15 = arith.maximumf %13, %14 : vector<32x64xf32>
    %16 = arith.truncf %15 : vector<32x64xf32> to vector<32x64xbf16>
    %c0_12 = arith.constant 0 : index
    %c0_13 = arith.constant 0 : index
    %17 = vector.load %arg6[%c0_12, %c0_13] : memref<64x4xbf16, #tpu.memory_space<vmem>>, vector<64x4xbf16>
    %cst_14 = arith.constant dense<0.000000e+00> : vector<32x4xf32>
    %18 = tpu.matmul %16, %17, %cst_14 {dimension_numbers = #tpu.dot_dimension_numbers<[1], [0], [0], [1], [0, 0, 1, 1], [], []>} : vector<32x64xbf16>, vector<64x4xbf16>, vector<32x4xf32> -> vector<32x4xf32>
    %c0_15 = arith.constant 0 : index
    %c0_16 = arith.constant 0 : index
    %19 = vector.load %arg7[%c0_15, %c0_16] : memref<1x4xf32, #tpu.memory_space<vmem>>, vector<1x4xf32>
    %20 = vector.broadcast %19 : vector<1x4xf32> to vector<32x4xf32>
    %21 = arith.addf %18, %20 : vector<32x4xf32>
    %22 = math.tanh %21 : vector<32x4xf32>
    %c0_17 = arith.constant 0 : index
    %c0_18 = arith.constant 0 : index
    %23 = vector.load %arg8[%c0_17, %c0_18] : memref<32x4xf32, #tpu.memory_space<vmem>>, vector<32x4xf32>
    tpu.vector_store %arg8[%c0_17, %c0_18], %22 {strides = array<i32>} : memref<32x4xf32, #tpu.memory_space<vmem>>, vector<32x4xf32>,
    return
  }
  func.func @transform_0(%arg0: i32) -> (i32, i32) {
    %c0_i32 = arith.constant 0 : i32
    %c0_i32_0 = arith.constant 0 : i32
    return %arg0, %c0_i32 : i32, i32
  }
  func.func @transform_1(%arg0: i32) -> (i32, i32) {
    %c0_i32 = arith.constant 0 : i32
    %c0_i32_0 = arith.constant 0 : i32
    %c0_i32_1 = arith.constant 0 : i32
    return %c0_i32, %c0_i32_0 : i32, i32
  }
  func.func @transform_2(%arg0: i32) -> (i32, i32) {
    %c0_i32 = arith.constant 0 : i32
    %c0_i32_0 = arith.constant 0 : i32
    %c0_i32_1 = arith.constant 0 : i32
    return %c0_i32, %c0_i32_0 : i32, i32
  }
  func.func @transform_3(%arg0: i32) -> (i32, i32) {
    %c0_i32 = arith.constant 0 : i32
    %c0_i32_0 = arith.constant 0 : i32
    %c0_i32_1 = arith.constant 0 : i32
    return %c0_i32, %c0_i32_0 : i32, i32
  }
  func.func @transform_4(%arg0: i32) -> (i32, i32) {
    %c0_i32 = arith.constant 0 : i32
    %c0_i32_0 = arith.constant 0 : i32
    %c0_i32_1 = arith.constant 0 : i32
    return %c0_i32, %c0_i32_0 : i32, i32
  }
  func.func @transform_5(%arg0: i32) -> (i32, i32) {
    %c0_i32 = arith.constant 0 : i32
    %c0_i32_0 = arith.constant 0 : i32
    %c0_i32_1 = arith.constant 0 : i32
    return %c0_i32, %c0_i32_0 : i32, i32
  }
  func.func @transform_6(%arg0: i32) -> (i32, i32) {
    %c0_i32 = arith.constant 0 : i32
    %c0_i32_0 = arith.constant 0 : i32
    %c0_i32_1 = arith.constant 0 : i32
    return %c0_i32, %c0_i32_0 : i32, i32
  }
  func.func @transform_7(%arg0: i32) -> (i32, i32) {
    %c0_i32 = arith.constant 0 : i32
    %c0_i32_0 = arith.constant 0 : i32
    return %arg0, %c0_i32 : i32, i32
  }
}

</mosaic_0001>

<llo_original>
// kernel: pose_predict_batch.1
$region0: #{pose_predict_batch.1}
  #allocation0 [shape = 'u32[]', space=smem, size = 0x4, offset = 0x4, fixed_abs, tag = 'smem constant byte address 0x4 - core index']
  #allocation1 [shape = 'u32[72,128]{1,0:T(1,128)}', space=vmem, size = 0x9000, scoped, tag = 'internal scratch']
  %s0 = inlined_call_operand.vmem [shape: bf16[32,256], index: 0, kind: input, shape index: {}]
  %s1 = inlined_call_operand.vmem [shape: bf16[256,32], index: 1, kind: input, shape index: {}]
  %s2 = inlined_call_operand.vmem [shape: f32[1,32], index: 2, kind: input, shape index: {}]
  %s3 = inlined_call_operand.vmem [shape: bf16[32,64], index: 3, kind: input, shape index: {}]
  %s4 = inlined_call_operand.vmem [shape: f32[1,64], index: 4, kind: input, shape index: {}]
  %s5 = inlined_call_operand.vmem [shape: bf16[64,4], index: 5, kind: input, shape index: {}]
  %s6 = inlined_call_operand.vmem [shape: f32[1,4], index: 6, kind: input, shape index: {}]
  %s7 = inlined_call_operand.vmem [shape: f32[32,4], index: 7, kind: output, shape index: {}]
  %s8 = sld [smem:[#allocation0]]
  $region38: #{pose_predict_batch.1} parent=0
    _
  %s10 = ssub.s32 1, %s8
  %s11 = scalar_select 0, %s10, %s8
  // Predicated region
  $region2: #{pose_predict_batch.1} parent=0 // pred_check
    _
  $region3: #{pose_predict_batch.1} parent=0 // pred_check_branch
    %13 = sbr.rel (0) target = $region5
  $region4: #{pose_predict_batch.1} parent=0 // pred_region
    _
  $region5: #{pose_predict_batch.1} parent=0 // pred_fallthru
    _
  // Predicated region
  $region6: #{pose_predict_batch.1} parent=0 // pred_check
    _
  $region7: #{pose_predict_batch.1} parent=0 // pred_check_branch
    %15 = sbr.rel (0) target = $region9
  $region8: #{pose_predict_batch.1} parent=0 // pred_region
    _
  $region9: #{pose_predict_batch.1} parent=0 // pred_fallthru
    _
  // Predicated region
  $region10: #{pose_predict_batch.1} parent=0 // pred_check
    _
  $region11: #{pose_predict_batch.1} parent=0 // pred_check_branch
    %17 = sbr.rel (0) target = $region13
  $region12: #{pose_predict_batch.1} parent=0 // pred_region
    _
  $region13: #{pose_predict_batch.1} parent=0 // pred_fallthru
    _
  // Predicated region
  $region14: #{pose_predict_batch.1} parent=0 // pred_check
    _
  $region15: #{pose_predict_batch.1} parent=0 // pred_check_branch
    %19 = sbr.rel (0) target = $region17
  $region16: #{pose_predict_batch.1} parent=0 // pred_region
    _
  $region17: #{pose_predict_batch.1} parent=0 // pred_fallthru
    _
  // Predicated region
  $region18: #{pose_predict_batch.1} parent=0 // pred_check
    _
  $region19: #{pose_predict_batch.1} parent=0 // pred_check_branch
    %21 = sbr.rel (0) target = $region21
  $region20: #{pose_predict_batch.1} parent=0 // pred_region
    _
  $region21: #{pose_predict_batch.1} parent=0 // pred_fallthru
    _
  // Predicated region
  $region22: #{pose_predict_batch.1} parent=0 // pred_check
    _
  $region23: #{pose_predict_batch.1} parent=0 // pred_check_branch
    %23 = sbr.rel (0) target = $region25
  $region24: #{pose_predict_batch.1} parent=0 // pred_region
    _
  $region25: #{pose_predict_batch.1} parent=0 // pred_fallthru
    _
  // Predicated region
  $region26: #{pose_predict_batch.1} parent=0 // pred_check
    _
  $region27: #{pose_predict_batch.1} parent=0 // pred_check_branch
    %25 = sbr.rel (0) target = $region29
  $region28: #{pose_predict_batch.1} parent=0 // pred_region
    _
  $region29: #{pose_predict_batch.1} parent=0 // pred_fallthru
    _
  %v27 = vld [vmem:[%s0] sm:$0xff]
  %v28 = vld [vmem:[%s0 + $0x8] sm:$0xff]
  %v29 = vld [vmem:[%s0 + $0x10] sm:$0xff]
  %v30 = vld [vmem:[%s0 + $0x18] sm:$0xff]
  %v31 = vld [vmem:[%s1] sm:$0xf]
  %v32 = vld [vmem:[%s1 + $0x4] sm:$0xf]
  %v33 = vld [vmem:[%s1 + $0x8] sm:$0xf]
  %v34 = vld [vmem:[%s1 + $0xc] sm:$0xf]
  %v35 = vld [vmem:[%s1 + $0x10] sm:$0xf]
  %v36 = vld [vmem:[%s1 + $0x14] sm:$0xf]
  %v37 = vld [vmem:[%s1 + $0x18] sm:$0xf]
  %v38 = vld [vmem:[%s1 + $0x1c] sm:$0xf]
  %v39 = vld [vmem:[%s1 + $0x20] sm:$0xf]
  %v40 = vld [vmem:[%s1 + $0x24] sm:$0xf]
  %v41 = vld [vmem:[%s1 + $0x28] sm:$0xf]
  %v42 = vld [vmem:[%s1 + $0x2c] sm:$0xf]
  %v43 = vld [vmem:[%s1 + $0x30] sm:$0xf]
  %v44 = vld [vmem:[%s1 + $0x34] sm:$0xf]
  %v45 = vld [vmem:[%s1 + $0x38] sm:$0xf]
  %v46 = vld [vmem:[%s1 + $0x3c] sm:$0xf]
  %v47 = vld [vmem:[%s1 + $0x40] sm:$0xf]
  %v48 = vld [vmem:[%s1 + $0x44] sm:$0xf]
  %v49 = vld [vmem:[%s1 + $0x48] sm:$0xf]
  %v50 = vld [vmem:[%s1 + $0x4c] sm:$0xf]
  %v51 = vld [vmem:[%s1 + $0x50] sm:$0xf]
  %v52 = vld [vmem:[%s1 + $0x54] sm:$0xf]
  %v53 = vld [vmem:[%s1 + $0x58] sm:$0xf]
  %v54 = vld [vmem:[%s1 + $0x5c] sm:$0xf]
  %v55 = vld [vmem:[%s1 + $0x60] sm:$0xf]
  %v56 = vld [vmem:[%s1 + $0x64] sm:$0xf]
  %v57 = vld [vmem:[%s1 + $0x68] sm:$0xf]
  %v58 = vld [vmem:[%s1 + $0x6c] sm:$0xf]
  %v59 = vld [vmem:[%s1 + $0x70] sm:$0xf]
  %v60 = vld [vmem:[%s1 + $0x74] sm:$0xf]
  %v61 = vld [vmem:[%s1 + $0x78] sm:$0xf]
  %v62 = vld [vmem:[%s1 + $0x7c] sm:$0xf]
  %v63 = vld [vmem:[%s2] sm:$0x1]
  %v65 = vperm.slane %v63, 0
  %v71 = vunpack.c.l.b16 %v27
  %v72 = vunpack.c.h.b16 %v27
  %v73 = vunpack.c.l.b16 %v28
  %v74 = vunpack.c.h.b16 %v28
  %v75 = vunpack.c.l.b16 %v29
  %v76 = vunpack.c.h.b16 %v29
  %v77 = vunpack.c.l.b16 %v30
  %v78 = vunpack.c.h.b16 %v30
  %v79 = vpack.c.b16 %v73, %v71
  %v80 = vpack.c.b16 %v74, %v72
  %v81 = vpack.c.b16 %v77, %v75
  %v82 = vpack.c.b16 %v78, %v76
  %v119 = vunpack.c.l.b16 %v31
  %v120 = vunpack.c.l.b16 %v32
  %v121 = vunpack.c.l.b16 %v33
  %v122 = vunpack.c.l.b16 %v34
  %v123 = vunpack.c.l.b16 %v35
  %v124 = vunpack.c.l.b16 %v36
  %v125 = vunpack.c.l.b16 %v37
  %v126 = vunpack.c.l.b16 %v38
  %v127 = vunpack.c.l.b16 %v39
  %v128 = vunpack.c.l.b16 %v40
  %v129 = vunpack.c.l.b16 %v41
  %v130 = vunpack.c.l.b16 %v42
  %v131 = vunpack.c.l.b16 %v43
  %v132 = vunpack.c.l.b16 %v44
  %v133 = vunpack.c.l.b16 %v45
  %v134 = vunpack.c.l.b16 %v46
  %v135 = vunpack.c.l.b16 %v47
  %v136 = vunpack.c.l.b16 %v48
  %v137 = vunpack.c.l.b16 %v49
  %v138 = vunpack.c.l.b16 %v50
  %v139 = vunpack.c.l.b16 %v51
  %v140 = vunpack.c.l.b16 %v52
  %v141 = vunpack.c.l.b16 %v53
  %v142 = vunpack.c.l.b16 %v54
  %v143 = vunpack.c.l.b16 %v55
  %v144 = vunpack.c.l.b16 %v56
  %v145 = vunpack.c.l.b16 %v57
  %v146 = vunpack.c.l.b16 %v58
  %v147 = vunpack.c.l.b16 %v59
  %v148 = vunpack.c.l.b16 %v60
  %v149 = vunpack.c.l.b16 %v61
  %v150 = vunpack.c.l.b16 %v62
  %v151 = vpack.c.b16 %v120, %v119
  %v152 = vpack.c.b16 %v122, %v121
  %v153 = vpack.c.b16 %v124, %v123
  %v154 = vpack.c.b16 %v126, %v125
  %v155 = vpack.c.b16 %v128, %v127
  %v156 = vpack.c.b16 %v130, %v129
  %v157 = vpack.c.b16 %v132, %v131
  %v158 = vpack.c.b16 %v134, %v133
  %v159 = vpack.c.b16 %v136, %v135
  %v160 = vpack.c.b16 %v138, %v137
  %v161 = vpack.c.b16 %v140, %v139
  %v162 = vpack.c.b16 %v142, %v141
  %v163 = vpack.c.b16 %v144, %v143
  %v164 = vpack.c.b16 %v146, %v145
  %v165 = vpack.c.b16 %v148, %v147
  %v166 = vpack.c.b16 %v150, %v149
  %183 = vmatpush.bf16.msra.mxu0 %v158
  %184 = vmatpush.bf16.msra.mxu0 %v157
  %185 = vmatpush.bf16.msra.mxu0 %v156
  %186 = vmatpush.bf16.msra.mxu0 %v155
  %187 = vmatpush.bf16.msra.mxu0 %v154
  %188 = vmatpush.bf16.msra.mxu0 %v153
  %189 = vmatpush.bf16.msra.mxu0 %v152
  %190 = vmatpush.bf16.msra.mxu0 %v151
  %191 = vmatmul.bf16.gmra.mxu0 %v79
  %v192 = vpop.f32.mrf.mxu0
  %v193 = vadd.f32 %v65, %v192
  %v194 = vpop.f32.mrf.mxu0
  %v195 = vadd.f32 %v65, %v194
  %196 = vmatmul.bf16.gmra.mxu0 %v81
  %v197 = vpop.f32.mrf.mxu0
  %v198 = vadd.f32 %v65, %v197
  %v199 = vpop.f32.mrf.mxu0
  %v200 = vadd.f32 %v65, %v199
  %201 = vdwg.mxu0
  %202 = vmatpush.bf16.msra.mxu0 %v166
  %203 = vmatpush.bf16.msra.mxu0 %v165
  %204 = vmatpush.bf16.msra.mxu0 %v164
  %205 = vmatpush.bf16.msra.mxu0 %v163
  %206 = vmatpush.bf16.msra.mxu0 %v162
  %207 = vmatpush.bf16.msra.mxu0 %v161
  %208 = vmatpush.bf16.msra.mxu0 %v160
  %209 = vmatpush.bf16.msra.mxu0 %v159
  %210 = vmatmul.bf16.gmra.mxu0 %v80
  %v211 = vpop.f32.mrf.mxu0
  %v212 = vadd.f32 %v193, %v211
  %v213 = vpop.f32.mrf.mxu0
  %v214 = vadd.f32 %v195, %v213
  %215 = vmatmul.bf16.gmra.mxu0 %v82
  %v216 = vpop.f32.mrf.mxu0
  %v217 = vadd.f32 %v198, %v216
  %v218 = vpop.f32.mrf.mxu0
  %v219 = vadd.f32 %v200, %v218
  %220 = vdwg.mxu0
  %v221 = vmax.f32 %v212, 0.0
  %v222 = vmax.f32 %v214, 0.0
  %v223 = vmax.f32 %v217, 0.0
  %v224 = vmax.f32 %v219, 0.0
  %v225 = vpack.c.bf16 %v222, %v221
  %v226 = vpack.c.bf16 %v224, %v223
  %v227 = vld [vmem:[%s3] sm:$0xf]
  %v228 = vld [vmem:[%s3 + $0x4] sm:$0xf]
  %v229 = vld [vmem:[%s3 + $0x8] sm:$0xf]
  %v230 = vld [vmem:[%s3 + $0xc] sm:$0xf]
  %v231 = vld [vmem:[%s4] sm:$0x1]
  %v233 = vperm.slane %v231, 0
  %v239 = vunpack.c.l.b16 %v227
  %v240 = vunpack.c.l.b16 %v228
  %v241 = vunpack.c.l.b16 %v229
  %v242 = vunpack.c.l.b16 %v230
  %v243 = vpack.c.b16 %v240, %v239
  %v244 = vpack.c.b16 %v242, %v241
  %vm247 = vcmask 261120
  %v249 = vsel %vm247, %v225, 0
  %v252 = vsel %vm247, %v226, 0
  %254 = vmatpush.bf16.msra.mxu0 0
  %255 = vmatpush.bf16.msra.mxu0 0
  %256 = vmatpush.bf16.msra.mxu0 0
  %257 = vmatpush.bf16.msra.mxu0 0
  %258 = vmatpush.bf16.msra.mxu0 0
  %259 = vmatpush.bf16.msra.mxu0 0
  %260 = vmatpush.bf16.msra.mxu0 %v244
  %261 = vmatpush.bf16.msra.mxu0 %v243
  %262 = vmatmul.bf16.gmra.mxu0 %v249
  %v263 = vpop.f32.mrf.mxu0
  %v264 = vadd.f32 %v233, %v263
  %v265 = vpop.f32.mrf.mxu0
  %v266 = vadd.f32 %v233, %v265
  %267 = vmatmul.bf16.gmra.mxu0 %v252
  %v268 = vpop.f32.mrf.mxu0
  %v269 = vadd.f32 %v233, %v268
  %v270 = vpop.f32.mrf.mxu0
  %v271 = vadd.f32 %v233, %v270
  %272 = vdwg.mxu0
  %v273 = vmax.f32 %v264, 0.0
  %v274 = vmax.f32 %v266, 0.0
  %v275 = vmax.f32 %v269, 0.0
  %v276 = vmax.f32 %v271, 0.0
  %v277 = vpack.c.bf16 %v274, %v273
  %v278 = vpack.c.bf16 %v276, %v275
  %v279 = vld [vmem:[%s5] sm:$0xf]
  %v280 = vld [vmem:[%s5 + $0x4] sm:$0xf]
  %v281 = vld [vmem:[%s5 + $0x8] sm:$0xf]
  %v282 = vld [vmem:[%s5 + $0xc] sm:$0xf]
  %v283 = vld [vmem:[%s5 + $0x10] sm:$0xf]
  %v284 = vld [vmem:[%s5 + $0x14] sm:$0xf]
  %v285 = vld [vmem:[%s5 + $0x18] sm:$0xf]
  %v286 = vld [vmem:[%s5 + $0x1c] sm:$0xf]
  %v287 = vld [vmem:[%s6] sm:$0x1]
  %v289 = vperm.slane %v287, 0
  %v299 = vunpack.c.l.b16 %v279
  %v300 = vunpack.c.l.b16 %v280
  %v301 = vunpack.c.l.b16 %v281
  %v302 = vunpack.c.l.b16 %v282
  %v303 = vunpack.c.l.b16 %v283
  %v304 = vunpack.c.l.b16 %v284
  %v305 = vunpack.c.l.b16 %v285
  %v306 = vunpack.c.l.b16 %v286
  %v307 = vpack.c.b16 %v300, %v299
  %v308 = vpack.c.b16 %v302, %v301
  %v309 = vpack.c.b16 %v304, %v303
  %v310 = vpack.c.b16 %v306, %v305
  %vm315 = vcmask 523264
  %v317 = vsel %vm315, %v277, 0
  %v320 = vsel %vm315, %v278, 0
  %322 = vmatpush.bf16.msra.mxu0 0
  %323 = vmatpush.bf16.msra.mxu0 0
  %324 = vmatpush.bf16.msra.mxu0 0
  %325 = vmatpush.bf16.msra.mxu0 0
  %326 = vmatpush.bf16.msra.mxu0 %v310
  %327 = vmatpush.bf16.msra.mxu0 %v309
  %328 = vmatpush.bf16.msra.mxu0 %v308
  %329 = vmatpush.bf16.msra.mxu0 %v307
  %330 = vmatmul.bf16.gmra.mxu0 %v317
  %v331 = vpop.f32.mrf.mxu0
  %v332 = vadd.f32 %v289, %v331
  %v333 = vpop.f32.mrf.mxu0
  %v334 = vadd.f32 %v289, %v333
  %335 = vmatmul.bf16.gmra.mxu0 %v320
  %v336 = vpop.f32.mrf.mxu0
  %v337 = vadd.f32 %v289, %v336
  %v338 = vpop.f32.mrf.mxu0
  %v339 = vadd.f32 %v289, %v338
  %340 = vdwg.mxu0
  %v341 = vtanh.pop %v332
  %v342 = vtanh.pop %v334
  %v343 = vtanh.pop %v337
  %v344 = vtanh.pop %v339
  %vm345 = vcmask 31744
  %346 = vst.msk [vmem:[%s7] sm:$0xff] %vm345, %v341
  %347 = vst.msk [vmem:[%s7 + $0x8] sm:$0xff] %vm345, %v342
  %348 = vst.msk [vmem:[%s7 + $0x10] sm:$0xff] %vm345, %v343
  %349 = vst.msk [vmem:[%s7 + $0x18] sm:$0xff] %vm345, %v344
  // Predicated region
  $region30: #{pose_predict_batch.1} parent=0 // pred_check
    _
  $region31: #{pose_predict_batch.1} parent=0 // pred_check_branch
    %351 = sbr.rel (0) target = $region33
  $region32: #{pose_predict_batch.1} parent=0 // pred_region
    _
  $region33: #{pose_predict_batch.1} parent=0 // pred_fallthru
    _
  // Predicated region
  $region34: #{pose_predict_batch.1} parent=0 // pred_check
    _
  $region35: #{pose_predict_batch.1} parent=0 // pred_check_branch
    %353 = sbr.rel (0) target = $region37
  $region36: #{pose_predict_batch.1} parent=0 // pred_region
    _
  $region37: #{pose_predict_batch.1} parent=0 // pred_fallthru
    _

</llo_original>
